<compile_context>
chip_gen: v5e
topology: v5e:2x2
jax: 0.10.0
libtpu: 0.0.40
codegen_flags: <defaults>
</compile_context>

<pallas_src>
import functools

import jax
import jax.numpy as jnp
from jax import lax
from jax.experimental import pallas as pl
from jax.experimental.pallas import tpu as pltpu


def _round_up(x, m):
    return ((x + m - 1) // m) * m


@functools.lru_cache(maxsize=1)
def _tpu_vmem_capacity_bytes():
    try:
        return int(pltpu.get_tpu_info().vmem_capacity_bytes)
    except Exception:
        return 64 * 1024 * 1024          # conservative (v7x-sized) fallback


def _vmem_limit_bytes():
    cap = _tpu_vmem_capacity_bytes()
    return int(min(cap * 3 // 4, 96 * 1024 * 1024))


# ----------------------------------------------------------------------------
# Kernel 0: the Attention module itself (the literal PyTorch spec)
#   scores  = ||entity_agg - user_emb + eps||_2   (per row)
#   weights = softmax(-scores, dim=0)
#   out     = weights @ entity_agg
# ----------------------------------------------------------------------------
def _attention_kernel(ent_ref, usr_ref, out_ref, *, eps):
    e = ent_ref[...]
    u = usr_ref[...]
    d = e - u + eps                                       # F.pairwise_distance eps
    dist = jnp.sqrt(jnp.sum(d * d, axis=1, keepdims=True))   # (N, 1)
    s = -dist
    m = jnp.max(s, axis=0, keepdims=True)
    w = jnp.exp(s - m)
    w = w / jnp.sum(w, axis=0, keepdims=True)             # softmax over dim 0
    out_ref[...] = jnp.sum(w * e, axis=0, keepdims=True)  # (1, D) == weights @ e


def attention_pallas(entity_agg, user_emb, eps=1e-6):
    n, d = entity_agg.shape
    kern = functools.partial(_attention_kernel, eps=eps)
    out = pl.pallas_call(
        kern,
        grid=(1,),
        in_specs=[pl.BlockSpec((n, d), lambda i: (0, 0)),
                  pl.BlockSpec((n, d), lambda i: (0, 0))],
        out_specs=pl.BlockSpec((1, d), lambda i: (0, 0)),
        out_shape=jax.ShapeDtypeStruct((1, d), jnp.float32),
        cost_estimate=pl.CostEstimate(flops=8 * n * d, transcendentals=2 * n,
                                      bytes_accessed=4 * (2 * n * d + d)),
    )(entity_agg.astype(jnp.float32), user_emb.astype(jnp.float32))
    return out[0]


# ----------------------------------------------------------------------------
# Kernel 1: KG entity aggregation hop over a flattened (ent_tile, edge_tile)
#           work list (scatter-sum + in-kernel relation join + L2 norm + residual)
# ----------------------------------------------------------------------------
def _entity_hop_kernel(ent_of_ref, edge_of_ref, active_ref,       # scalar prefetch
                       heads_ref, etype_ref, rel_ref, tail_ref, res_ref,
                       ent_out_ref, res_out_ref, acc_ref):
    w = pl.program_id(0)
    nw = pl.num_programs(0)
    i = ent_of_ref[w]                                    # current entity tile
    ent_tm = acc_ref.shape[0]
    edge_tk = tail_ref.shape[0]
    r_pad = rel_ref.shape[0]

    prev_i = ent_of_ref[jnp.maximum(w - 1, 0)]
    next_i = ent_of_ref[jnp.minimum(w + 1, nw - 1)]
    is_first = jnp.logical_or(w == 0, prev_i != i)       # first step of this tile's run
    is_last = jnp.logical_or(w == nw - 1, next_i != i)   # last step of this tile's run

    @pl.when(is_first)
    def _():
        acc_ref[...] = jnp.zeros_like(acc_ref)

    @pl.when(active_ref[w] != 0)
    def _():
        # Relation join: rows of the VMEM-resident (r_pad, dim) table, gathered per edge
        # via a tiny one-hot MXU matmul (bf16 feeds are exact for the one-hot).
        rel_onehot = (etype_ref[...] ==
                      lax.broadcasted_iota(jnp.int32, (edge_tk, r_pad), 1)
                      ).astype(jnp.bfloat16)
        rel_rows = jnp.dot(rel_onehot, rel_ref[...].astype(jnp.bfloat16),
                           preferred_element_type=jnp.float32)
        neigh = (tail_ref[...] * rel_rows).astype(jnp.bfloat16)     # (edge_tk, dim)

        # Scatter-sum: one-hot(head == tile-local row id) built directly in bf16.
        row_ids = lax.broadcasted_iota(jnp.int32, (ent_tm, edge_tk), 0)
        heads_local = heads_ref[...] - i * ent_tm                   # (1, edge_tk)
        onehot = (row_ids == heads_local).astype(jnp.bfloat16)
        acc_ref[...] += jnp.dot(onehot, neigh, preferred_element_type=jnp.float32)

    @pl.when(is_last)
    def _():
        agg = acc_ref[...]
        ss = jnp.sum(agg * agg, axis=-1, keepdims=True)
        # F.normalize(p=2, dim=1, eps=1e-12)  ==  x * rsqrt(max(||x||^2, eps^2))
        normed = agg * lax.rsqrt(jnp.maximum(ss, 1e-24))
        ent_out_ref[...] = normed
        res_out_ref[...] = res_ref[...] + normed                    # fused residual


def entity_hop_pallas(ent_of, edge_of, active, heads2d, etype_col, rel_table,
                      tail_emb, entity_res, *, ent_tm, edge_tk):
    n_ent_pad, dim_pad = entity_res.shape
    n_edges_pad = tail_emb.shape[0]
    r_pad = rel_table.shape[0]
    n_work = ent_of.shape[0]

    def ent_blk(w, eo, ko, ao):
        return (eo[w], 0)

    grid_spec = pltpu.PrefetchScalarGridSpec(
        num_scalar_prefetch=3,
        grid=(n_work,),
        in_specs=[
            pl.BlockSpec((1, edge_tk), lambda w, eo, ko, ao: (0, ko[w])),      # heads
            pl.BlockSpec((edge_tk, 1), lambda w, eo, ko, ao: (ko[w], 0)),      # etype
            pl.BlockSpec((r_pad, dim_pad), lambda w, eo, ko, ao: (0, 0)),      # rel tbl
            pl.BlockSpec((edge_tk, dim_pad), lambda w, eo, ko, ao: (ko[w], 0)),  # tails
            pl.BlockSpec((ent_tm, dim_pad), ent_blk),                          # residual
        ],
        out_specs=(
            pl.BlockSpec((ent_tm, dim_pad), ent_blk),
            pl.BlockSpec((ent_tm, dim_pad), ent_blk),
        ),
        scratch_shapes=[pltpu.VMEM((ent_tm, dim_pad), jnp.float32)],
    )
    flops = (2 * n_edges_pad * ent_tm * dim_pad
             + 2 * n_edges_pad * r_pad * dim_pad
             + 4 * n_ent_pad * dim_pad)
    bytes_accessed = 4 * (n_edges_pad * dim_pad + 3 * n_ent_pad * dim_pad
                          + 2 * n_edges_pad)
    return pl.pallas_call(
        _entity_hop_kernel,
        grid_spec=grid_spec,
        out_shape=(
            jax.ShapeDtypeStruct((n_ent_pad, dim_pad), jnp.float32),
            jax.ShapeDtypeStruct((n_ent_pad, dim_pad), jnp.float32),
        ),
        compiler_params=pltpu.CompilerParams(
            dimension_semantics=("arbitrary",),
            vmem_limit_bytes=_vmem_limit_bytes()),
        cost_estimate=pl.CostEstimate(flops=flops, transcendentals=n_ent_pad,
                                      bytes_accessed=bytes_accessed),
    )(ent_of, edge_of, active, heads2d, etype_col, rel_table, tail_emb, entity_res)


# ----------------------------------------------------------------------------
# Kernel 2: user aggregation hop (interact_mat @ entity_emb + normalize + residual)
# ----------------------------------------------------------------------------
def _user_hop_kernel(inter_ref, ent_ref, res_ref, usr_out_ref, res_out_ref, acc_ref):
    k = pl.program_id(1)

    @pl.when(k == 0)
    def _():
        acc_ref[...] = jnp.zeros_like(acc_ref)

    acc_ref[...] += jnp.dot(inter_ref[...],                          # bf16 in HBM
                            ent_ref[...].astype(jnp.bfloat16),
                            preferred_element_type=jnp.float32)

    @pl.when(k == pl.num_programs(1) - 1)
    def _():
        agg = acc_ref[...]
        ss = jnp.sum(agg * agg, axis=-1, keepdims=True)
        normed = agg * lax.rsqrt(jnp.maximum(ss, 1e-24))
        usr_out_ref[...] = normed
        res_out_ref[...] = res_ref[...] + normed


def user_hop_pallas(interact_mat, entity_emb, user_res, *, user_tm, user_tk):
    n_users_pad, n_ent_pad = interact_mat.shape
    dim_pad = entity_emb.shape[1]
    grid = (n_users_pad // user_tm, n_ent_pad // user_tk)

    grid_spec = pltpu.PrefetchScalarGridSpec(
        num_scalar_prefetch=0,
        grid=grid,
        in_specs=[
            pl.BlockSpec((user_tm, user_tk), lambda i, k: (i, k)),
            pl.BlockSpec((user_tk, dim_pad), lambda i, k: (k, 0)),
            pl.BlockSpec((user_tm, dim_pad), lambda i, k: (i, 0)),
        ],
        out_specs=(
            pl.BlockSpec((user_tm, dim_pad), lambda i, k: (i, 0)),
            pl.BlockSpec((user_tm, dim_pad), lambda i, k: (i, 0)),
        ),
        scratch_shapes=[pltpu.VMEM((user_tm, dim_pad), jnp.float32)],
    )
    flops = 2 * n_users_pad * n_ent_pad * dim_pad + 4 * n_users_pad * dim_pad
    bytes_accessed = (2 * n_users_pad * n_ent_pad                     # bf16 interact
                      + 4 * (n_ent_pad * dim_pad + 3 * n_users_pad * dim_pad))
    return pl.pallas_call(
        _user_hop_kernel,
        grid_spec=grid_spec,
        out_shape=(
            jax.ShapeDtypeStruct((n_users_pad, dim_pad), jnp.float32),
            jax.ShapeDtypeStruct((n_users_pad, dim_pad), jnp.float32),
        ),
        compiler_params=pltpu.CompilerParams(
            dimension_semantics=("parallel", "arbitrary"),
            vmem_limit_bytes=_vmem_limit_bytes()),
        cost_estimate=pl.CostEstimate(flops=flops, transcendentals=n_users_pad,
                                      bytes_accessed=bytes_accessed),
    )(interact_mat, entity_emb, user_res)


# ----------------------------------------------------------------------------
# Kernel 3: BPR loss
# ----------------------------------------------------------------------------
def _bpr_kernel(u_ref, pos_ref, neg_ref, out_ref, *, decay):
    u = u_ref[...]
    p = pos_ref[...]
    n = neg_ref[...]
    batch = u.shape[0]
    pos_scores = jnp.sum(u * p, axis=1, keepdims=True)
    neg_scores = jnp.sum(u * n, axis=1, keepdims=True)
    diff = pos_scores - neg_scores
    logsig = jnp.minimum(diff, 0.0) - jnp.log1p(jnp.exp(-jnp.abs(diff)))
    mf_loss = -jnp.sum(logsig) / batch
    regularizer = 0.5 * (jnp.sum(u * u) + jnp.sum(p * p) + jnp.sum(n * n))
    emb_loss = decay * regularizer / batch
    out_ref[...] = jnp.broadcast_to(mf_loss + emb_loss, (1, 1))


def bpr_loss_pallas(u_e, pos_e, neg_e, decay):
    b, d = u_e.shape
    kern = functools.partial(_bpr_kernel, decay=decay)
    out = pl.pallas_call(
        kern,
        grid=(1,),
        in_specs=[pl.BlockSpec((b, d), lambda i: (0, 0))] * 3,
        out_specs=pl.BlockSpec((1, 1), lambda i: (0, 0)),
        out_shape=jax.ShapeDtypeStruct((1, 1), jnp.float32),
        cost_estimate=pl.CostEstimate(flops=10 * b * d, transcendentals=2 * b,
                                      bytes_accessed=4 * (3 * b * d + 1)),
    )(u_e, pos_e, neg_e)
    return out[0, 0]


# ----------------------------------------------------------------------------
# Forward wrapper
# ----------------------------------------------------------------------------
def recommender_forward(all_embed, rel_weight, edge_index, edge_type, interact_mat,
                        user, pos_item, neg_item, *, n_users, n_hops, decay):
    """Recommender.forward(batch) -> BPR loss (node/mess dropout disabled)."""
    n_nodes, dim = all_embed.shape
    n_entities = n_nodes - n_users
    n_edges = edge_index.shape[1]
    n_relations = rel_weight.shape[0]

    # ---- tile sizes (v7x-safe defaults; pushed further when >=100MiB VMEM detected)
    big_vmem = _tpu_vmem_capacity_bytes() >= 100 * 1024 * 1024
    edge_tk_cap = 4096 if big_vmem else 2048
    ent_tm = 512 if n_entities >= 512 else _round_up(n_entities, 8)
    edge_tk = edge_tk_cap if n_edges >= edge_tk_cap else _round_up(n_edges, 8)
    user_tm = 512 if n_users >= 512 else _round_up(n_users, 8)
    dim_pad = _round_up(dim, 128)
    r_pad = _round_up(n_relations, 128)

    n_ent_pad = _round_up(n_entities, ent_tm)
    n_edges_pad = _round_up(n_edges, edge_tk)
    n_users_pad = _round_up(n_users, user_tm)
    if n_ent_pad <= 2048:
        user_tk = n_ent_pad
    else:
        user_tk = max(t for t in (2048, 1024, 512) if n_ent_pad % t == 0)

    def pad2d(x, rows, cols):
        return jnp.pad(x, ((0, rows - x.shape[0]), (0, cols - x.shape[1])))

    user_emb = all_embed[:n_users].astype(jnp.float32)
    entity_emb = all_embed[n_users:].astype(jnp.float32)
    entity_emb_p = pad2d(entity_emb, n_ent_pad, dim_pad)
    user_emb_p = pad2d(user_emb, n_users_pad, dim_pad)
    rel_table = jnp.pad(rel_weight.astype(jnp.float32),
                        ((0, r_pad - n_relations), (0, dim_pad - dim)))
    interact_p = pad2d(interact_mat.astype(jnp.float32),
                       n_users_pad, n_ent_pad).astype(jnp.bfloat16)

    # ---- sort edges by head once
    head = edge_index[0]
    tail = edge_index[1]
    order = jnp.argsort(head)
    head_s = head[order].astype(jnp.int32)
    tail_s = tail[order].astype(jnp.int32)
    etype_s = edge_type[order].astype(jnp.int32)

    n_ent_tiles = n_ent_pad // ent_tm
    n_edge_tiles = n_edges_pad // edge_tk

    # Per-entity-tile edge-tile ranges from the sorted head array.
    tile_starts = jnp.arange(n_ent_tiles, dtype=jnp.int32) * ent_tm
    lo_edge = jnp.searchsorted(head_s, tile_starts, side="left").astype(jnp.int32)
    hi_edge = jnp.searchsorted(head_s, tile_starts + ent_tm, side="left").astype(jnp.int32)
    lo_tile = lo_edge // edge_tk
    hi_tile = (hi_edge + edge_tk - 1) // edge_tk

    # Flattened 1-D work list (one slot per intersecting pair; >=1 slot per entity
    # tile so every output tile gets its normalize+residual finalize).  Static upper
    # bound: sum(max(hi-lo,1)) <= n_edge_tiles + 2*n_ent_tiles.
    counts = jnp.maximum(hi_tile - lo_tile, 1)
    offsets = jnp.concatenate(
        [jnp.zeros((1,), jnp.int32), jnp.cumsum(counts).astype(jnp.int32)])
    total = offsets[-1]
    n_work = n_edge_tiles + 2 * n_ent_tiles
    w_ids = jnp.arange(n_work, dtype=jnp.int32)
    ent_of = jnp.clip(jnp.searchsorted(offsets, w_ids, side="right") - 1,
                      0, n_ent_tiles - 1).astype(jnp.int32)
    local = w_ids - offsets[ent_of]
    seg_len = (hi_tile - lo_tile)[ent_of]
    active = jnp.logical_and(w_ids < total, local < seg_len).astype(jnp.int32)
    edge_of = jnp.clip(lo_tile[ent_of] + jnp.where(active != 0, local, 0),
                       0, n_edge_tiles - 1).astype(jnp.int32)

    # padded edge slots: head=-1 never matches a row id -> masked out in-kernel
    pad_e = n_edges_pad - n_edges
    head_pad = jnp.pad(head_s, (0, pad_e), constant_values=-1)
    tail_pad = jnp.pad(tail_s, (0, pad_e), constant_values=0)
    etype_pad = jnp.pad(etype_s, (0, pad_e), constant_values=0)
    heads2d = head_pad[None, :]                       # (1, n_edges_pad) int32
    etype_col = etype_pad[:, None]                    # (n_edges_pad, 1) int32

    entity_res = entity_emb_p
    user_res = user_emb_p
    for _ in range(n_hops):
        # TODO(synk): fuse this random-access row gather into the entity kernel.
        tail_emb = entity_emb_p[tail_pad]             # (n_edges_pad, dim_pad)
        entity_new, entity_res = entity_hop_pallas(
            ent_of, edge_of, active, heads2d, etype_col, rel_table,
            tail_emb, entity_res, ent_tm=ent_tm, edge_tk=edge_tk)
        user_new, user_res = user_hop_pallas(
            interact_p, entity_emb_p, user_res, user_tm=user_tm, user_tk=user_tk)
        entity_emb_p = entity_new
        user_emb_p = user_new

    u_e = user_res[user]              # padded columns are zero -> dot products exact
    pos_e = entity_res[pos_item]
    neg_e = entity_res[neg_item]
    return bpr_loss_pallas(u_e, pos_e, neg_e, decay)


# ----------------------------------------------------------------------------
# Pure-JAX references (for correctness checks)
# ----------------------------------------------------------------------------
def attention_reference(entity_agg, user_emb, eps=1e-6):
    dist = jnp.linalg.norm(entity_agg - user_emb + eps, axis=1)
    wts = jax.nn.softmax(-dist, axis=0)
    return wts @ entity_agg


def reference_forward(all_embed, rel_weight, edge_index, edge_type, interact_mat,
                      user, pos_item, neg_item, *, n_users, n_hops, decay):
    n_nodes, _ = all_embed.shape
    n_entities = n_nodes - n_users
    user_emb = all_embed[:n_users]
    entity_emb = all_embed[n_users:]
    entity_res, user_res = entity_emb, user_emb
    head, tail = edge_index[0], edge_index[1]

    def l2norm(x):
        return x / jnp.maximum(jnp.linalg.norm(x, axis=1, keepdims=True), 1e-12)

    for _ in range(n_hops):
        neigh = entity_emb[tail] * rel_weight[edge_type]
        entity_agg = jax.ops.segment_sum(neigh, head, num_segments=n_entities)
        user_agg = interact_mat @ entity_emb
        entity_emb = l2norm(entity_agg)
        user_emb = l2norm(user_agg)
        entity_res = entity_res + entity_emb
        user_res = user_res + user_emb

    u_e = user_res[user]
    pos_e = entity_res[pos_item]
    neg_e = entity_res[neg_item]
    b = u_e.shape[0]
    pos_scores = jnp.sum(u_e * pos_e, axis=1)
    neg_scores = jnp.sum(u_e * neg_e, axis=1)
    mf_loss = -jnp.mean(jax.nn.log_sigmoid(pos_scores - neg_scores))
    reg = 0.5 * (jnp.sum(u_e ** 2) + jnp.sum(pos_e ** 2) + jnp.sum(neg_e ** 2))
    return mf_loss + decay * reg / b


# ----------------------------------------------------------------------------
# Main
# ----------------------------------------------------------------------------
if __name__ == "__main__":
    n_users, n_items, n_entities = 8, 8, 16
    n_nodes = n_users + n_entities
    n_relations, dim = 4, 64
    n_edges, n_hops, batch = 32, 2, 4
    decay = 1e-4

    key = jax.random.PRNGKey(0)
    k = jax.random.split(key, 10)

    bound_e = (6.0 / (n_nodes + dim)) ** 0.5
    all_embed = jax.random.uniform(k[0], (n_nodes, dim), jnp.float32, -bound_e, bound_e)
    bound_w = (6.0 / (n_relations + dim)) ** 0.5
    rel_weight = jax.random.uniform(k[1], (n_relations, dim), jnp.float32, -bound_w, bound_w)

    head = jax.random.randint(k[2], (n_edges,), 0, n_entities)
    tail = jax.random.randint(k[3], (n_edges,), 0, n_entities)
    edge_index = jnp.stack([head, tail], axis=0)
    edge_type = jax.random.randint(k[4], (n_edges,), 0, n_relations)
    interact_mat = (jax.random.uniform(k[5], (n_users, n_entities)) < 0.3
                    ).astype(jnp.float32) / n_entities

    user = jax.random.randint(k[6], (batch,), 0, n_users)
    kp, kn = jax.random.split(k[7])
    pos_item = jax.random.randint(kp, (batch,), 0, n_items)
    neg_item = jax.random.randint(kn, (batch,), 0, n_items)

    # ---- Attention module (the literal spec)
    entity_agg_in = jax.random.normal(k[8], (n_entities, dim), jnp.float32)
    user_emb_in = jax.random.normal(k[9], (n_entities, dim), jnp.float32)
    attn_out = jax.block_until_ready(jax.jit(attention_pallas)(entity_agg_in, user_emb_in))
    attn_ref = attention_reference(entity_agg_in, user_emb_in)
    assert jnp.allclose(attn_out, attn_ref, rtol=1e-5, atol=1e-5), (attn_out, attn_ref)

    # ---- Full MetaKG recommender forward (use_attention=False branch)
    fwd = jax.jit(functools.partial(
        recommender_forward, n_users=n_users, n_hops=n_hops, decay=decay))
    loss = fwd(all_embed, rel_weight, edge_index, edge_type, interact_mat,
               user, pos_item, neg_item)
    loss = jax.block_until_ready(loss)

    ref = reference_forward(all_embed, rel_weight, edge_index, edge_type, interact_mat,
                            user, pos_item, neg_item,
                            n_users=n_users, n_hops=n_hops, decay=decay)
    # bf16 MXU feeds (per perf review) loosen the tolerance vs the pure-f32 reference.
    assert jnp.allclose(loss, ref, rtol=2e-2, atol=2e-2), (loss, ref)
    print("KERNEL_OK")
</pallas_src>

<mosaic_0001>
module attributes {stable_mosaic.version = 11 : i64} {
  func.func @_attention_kernel(%arg0: i32, %arg1: memref<16x64xf32, #tpu.memory_space<vmem>>, %arg2: memref<16x64xf32, #tpu.memory_space<vmem>>, %arg3: memref<1x64xf32, #tpu.memory_space<vmem>>) attributes {dimension_semantics = [#tpu.dimension_semantics<arbitrary>], iteration_bounds = array<i64: 1>, scalar_prefetch = 0 : i64, scratch_operands = 0 : i64, tpu.core_type = #tpu.core_type<tc>, window_params = [{pipeline_mode = #tpu.pipeline_mode<synchronous>, transform_indices = @transform_0, window_bounds = array<i64: 16, 64>}, {pipeline_mode = #tpu.pipeline_mode<synchronous>, transform_indices = @transform_1, window_bounds = array<i64: 16, 64>}, {pipeline_mode = #tpu.pipeline_mode<synchronous>, transform_indices = @transform_2, window_bounds = array<i64: 1, 64>}]} {
    %c0 = arith.constant 0 : index
    %c0_0 = arith.constant 0 : index
    %0 = vector.load %arg1[%c0, %c0_0] : memref<16x64xf32, #tpu.memory_space<vmem>>, vector<16x64xf32>
    %c0_1 = arith.constant 0 : index
    %c0_2 = arith.constant 0 : index
    %1 = vector.load %arg2[%c0_1, %c0_2] : memref<16x64xf32, #tpu.memory_space<vmem>>, vector<16x64xf32>
    %2 = arith.subf %0, %1 : vector<16x64xf32>
    %cst = arith.constant 9.99999997E-7 : f32
    %3 = vector.broadcast %cst : f32 to vector<16x64xf32>
    %4 = arith.addf %2, %3 : vector<16x64xf32>
    %5 = arith.mulf %4, %4 : vector<16x64xf32>
    %cst_3 = arith.constant dense<0.000000e+00> : vector<16xf32>
    %6 = vector.multi_reduction <add>, %5, %cst_3 [1] : vector<16x64xf32> to vector<16xf32>
    %7 = vector.shape_cast %6 : vector<16xf32> to vector<16x1xf32>
    %8 = math.sqrt %7 : vector<16x1xf32>
    %cst_4 = arith.constant 0.000000e+00 : f32
    %9 = vector.broadcast %cst_4 : f32 to vector<16x1xf32>
    %10 = arith.subf %9, %8 : vector<16x1xf32>
    %cst_5 = arith.constant dense<0xFF800000> : vector<1xf32>
    %11 = vector.multi_reduction <maximumf>, %10, %cst_5 [0] : vector<16x1xf32> to vector<1xf32>
    %12 = vector.shape_cast %11 : vector<1xf32> to vector<1x1xf32>
    %13 = vector.broadcast %12 : vector<1x1xf32> to vector<16x1xf32>
    %14 = arith.subf %10, %13 : vector<16x1xf32>
    %15 = math.exp %14 : vector<16x1xf32>
    %cst_6 = arith.constant dense<0.000000e+00> : vector<1xf32>
    %16 = vector.multi_reduction <add>, %15, %cst_6 [0] : vector<16x1xf32> to vector<1xf32>
    %17 = vector.shape_cast %16 : vector<1xf32> to vector<1x1xf32>
    %18 = vector.broadcast %17 : vector<1x1xf32> to vector<16x1xf32>
    %19 = arith.divf %15, %18 : vector<16x1xf32>
    %20 = vector.broadcast %19 : vector<16x1xf32> to vector<16x64xf32>
    %21 = arith.mulf %20, %0 : vector<16x64xf32>
    %cst_7 = arith.constant dense<0.000000e+00> : vector<64xf32>
    %22 = vector.multi_reduction <add>, %21, %cst_7 [0] : vector<16x64xf32> to vector<64xf32>
    %23 = vector.shape_cast %22 : vector<64xf32> to vector<1x64xf32>
    %c0_8 = arith.constant 0 : index
    %c0_9 = arith.constant 0 : index
    %24 = vector.load %arg3[%c0_8, %c0_9] : memref<1x64xf32, #tpu.memory_space<vmem>>, vector<1x64xf32>
    tpu.vector_store %arg3[%c0_8, %c0_9], %23 {strides = array<i32>} : memref<1x64xf32, #tpu.memory_space<vmem>>, vector<1x64xf32>,
    return
  }
  func.func @transform_0(%arg0: i32) -> (i32, i32) {
    %c0_i32 = arith.constant 0 : i32
    %c0_i32_0 = arith.constant 0 : i32
    %c0_i32_1 = arith.constant 0 : i32
    return %c0_i32, %c0_i32_0 : i32, i32
  }
  func.func @transform_1(%arg0: i32) -> (i32, i32) {
    %c0_i32 = arith.constant 0 : i32
    %c0_i32_0 = arith.constant 0 : i32
    %c0_i32_1 = arith.constant 0 : i32
    return %c0_i32, %c0_i32_0 : i32, i32
  }
  func.func @transform_2(%arg0: i32) -> (i32, i32) {
    %c0_i32 = arith.constant 0 : i32
    %c0_i32_0 = arith.constant 0 : i32
    %c0_i32_1 = arith.constant 0 : i32
    return %c0_i32, %c0_i32_0 : i32, i32
  }
}

</mosaic_0001>

<llo_original>
// kernel: attention_pallas.1
$region0: #{attention_pallas.1}
  #allocation0 [shape = 'u32[]', space=smem, size = 0x4, offset = 0x4, fixed_abs, tag = 'smem constant byte address 0x4 - core index']
  #allocation1 [shape = 'u32[72,128]{1,0:T(1,128)}', space=vmem, size = 0x9000, scoped, tag = 'internal scratch']
  %s0 = inlined_call_operand.hbm [shape: f32[16,64], index: 0, kind: input, shape index: {}]
  %s1 = inlined_call_operand.hbm [shape: f32[16,64], index: 1, kind: input, shape index: {}]
  %s2 = inlined_call_operand.hbm [shape: f32[1,64], index: 2, kind: output, shape index: {}]
  %s3 = sld [smem:[#allocation0]]
  $region26: #{attention_pallas.1} parent=0
    _
  %s5 = ssub.s32 1, %s3
  %s6 = scalar_select 0, %s5, %s3
  $region1: #{attention_pallas.1} parent=0
    #allocation2 [shape = 'u8[8192]{0}', space=vmem, size = 0x2000, scoped, tag = 'input window, operand 0, single buffered']
    #allocation3 [shape = 's32[1]{0}', space=sflag, size = 0x4, scoped, tag = 'scoped memory for attention_pallas.1']
    #allocation4 [shape = 's32[1]{0}', space=sflag, size = 0x4, scoped, tag = 'scoped memory for attention_pallas.1']
    #allocation5 [shape = 'u8[8192]{0}', space=vmem, size = 0x2000, scoped, tag = 'input window, operand 1, single buffered']
    #allocation6 [shape = 's32[1]{0}', space=sflag, size = 0x4, scoped, tag = 'scoped memory for attention_pallas.1']
    #allocation7 [shape = 'u8[512]{0}', space=vmem, size = 0x400, scoped, tag = 'output window, operand 0, single buffered']
    %7 = vsyncpa [#allocation3], 0
    %8 = vsyncpa [#allocation6], 0
    %9 = vsyncpa [#allocation4], 0
    // Predicated region
    $region2: #{attention_pallas.1} parent=1 // pred_check
      _
    $region3: #{attention_pallas.1} parent=1 // pred_check_branch
      %11 = sbr.rel (0) target = $region5
    $region4: #{attention_pallas.1} parent=1 // pred_region
      %13 = vsyncadd [#allocation3], 0
      %s14 = sshll.u32 %s0, 4
      %s15 = int_to_ptr.hbm [resolvable:$true] %s14
      %s16 = sshll.u32 [#allocation2], 4
      %s17 = int_to_ptr.vmem [resolvable:$true] %s16
      %22 = dma.hbm_to_vmem [thread:$0]  %s15, 256, %s17, [#allocation3], 128, 128, 8
    $region5: #{attention_pallas.1} parent=1 // pred_fallthru
      _
    // Predicated region
    $region6: #{attention_pallas.1} parent=1 // pred_check
      _
    $region7: #{attention_pallas.1} parent=1 // pred_check_branch
      %24 = sbr.rel (0) target = $region9
    $region8: #{attention_pallas.1} parent=1 // pred_region
      %26 = vsyncadd [#allocation6], 0
      %s27 = sshll.u32 %s1, 4
      %s28 = int_to_ptr.hbm [resolvable:$true] %s27
      %s29 = sshll.u32 [#allocation5], 4
      %s30 = int_to_ptr.vmem [resolvable:$true] %s29
      %35 = dma.hbm_to_vmem [thread:$0]  %s28, 256, %s30, [#allocation6], 128, 128, 8
    $region9: #{attention_pallas.1} parent=1 // pred_fallthru
      _
    // Predicated region
    $region10: #{attention_pallas.1} parent=1 // pred_check
      _
    $region11: #{attention_pallas.1} parent=1 // pred_check_branch
      %37 = sbr.rel (0) target = $region13
    $region12: #{attention_pallas.1} parent=1 // pred_region
      %39 = dma.done [#allocation3], 256
    $region13: #{attention_pallas.1} parent=1 // pred_fallthru
      _
    // Predicated region
    $region14: #{attention_pallas.1} parent=1 // pred_check
      _
    $region15: #{attention_pallas.1} parent=1 // pred_check_branch
      %41 = sbr.rel (0) target = $region17
    $region16: #{attention_pallas.1} parent=1 // pred_region
      %43 = dma.done [#allocation6], 256
    $region17: #{attention_pallas.1} parent=1 // pred_fallthru
      _
    %v44 = vld [vmem:[#allocation2] sm:$0xff]
    %v45 = vld [vmem:[#allocation2 + $0x8] sm:$0xff]
    %v46 = vld [vmem:[#allocation5] sm:$0xff]
    %v47 = vld [vmem:[#allocation5 + $0x8] sm:$0xff]
    %v48 = vsub.f32 %v44, %v46
    %v49 = vsub.f32 %v45, %v47
    %v50 = vadd.f32 %v48, 1e-06
    %v51 = vadd.f32 %v49, 1e-06
    %v52 = vmul.f32 %v50, %v50
    %v53 = vmul.f32 %v51, %v51
    %vm54 = vcmask 523264
    %v55 = vsel %vm54, %v52, 0.0
    %56 = vadd.xlane.f32.xlu0 %v55
    %v57 = vpop.xlane.xlu0 %56
    %v58 = vsel %vm54, %v53, 0.0
    %59 = vadd.xlane.f32.xlu0 %v58
    %v60 = vpop.xlane.xlu0 %59
    %v61 = vrsqrt.pop %v57
    %v62 = vmul.f32 %v61, %v57
    %v63 = vmul.f32 %v62, %v61
    %v64 = vmul.f32 0.5, %v63
    %v65 = vsub.f32 1.5, %v64
    %v66 = vmul.f32 %v61, %v65
    %v67 = vmul.f32 %v57, %v66
    %vm68 = vcmp.eq.f32.partialorder %v57, inf
    %v69 = vsel %vm68, %v57, %v67
    %vm70 = vcmp.eq.f32.partialorder %v57, 0.0
    %v71 = vand.u32 %v57, 2147483648
    %v72 = vsel %vm70, %v71, %v69
    %v73 = vrsqrt.pop %v60
    %v74 = vmul.f32 %v73, %v60
    %v75 = vmul.f32 %v74, %v73
    %v76 = vmul.f32 0.5, %v75
    %v77 = vsub.f32 1.5, %v76
    %v78 = vmul.f32 %v73, %v77
    %v79 = vmul.f32 %v60, %v78
    %vm80 = vcmp.eq.f32.partialorder %v60, inf
    %v81 = vsel %vm80, %v60, %v79
    %vm82 = vcmp.eq.f32.partialorder %v60, 0.0
    %v83 = vand.u32 %v60, 2147483648
    %v84 = vsel %vm82, %v83, %v81
    %v85 = vsub.f32 0.0, %v72
    %v86 = vsub.f32 0.0, %v84
    %v87 = vmax.f32 %v85, %v86
    %v88 = vrot.slane %v87, 4
    %v89 = vmax.f32 %v87, %v88
    %v90 = vrot.slane %v89, 2
    %v91 = vmax.f32 %v89, %v90
    %v92 = vrot.slane %v91, 1
    %v93 = vmax.f32 %v91, %v92
    %v94 = vsub.f32 %v85, %v93
    %v95 = vsub.f32 %v86, %v93
    %v96 = vmul.f32 %v94, 1.442695
    %v97 = vpow.pop %v96
    %v98 = vmul.f32 %v95, 1.442695
    %v99 = vpow.pop %v98
    %v100 = vadd.f32 %v97, %v99
    %v101 = vrot.slane %v100, 4
    %v102 = vadd.f32 %v100, %v101
    %v103 = vrot.slane %v102, 2
    %v104 = vadd.f32 %v102, %v103
    %v105 = vrot.slane %v104, 1
    %v106 = vadd.f32 %v104, %v105
    %v107 = vrcp.pop %v106
    %v108 = vmul.f32 %v106, %v107
    %v109 = vsub.f32 1.0, %v108
    %v110 = vmul.f32 %v107, %v109
    %v111 = vadd.f32 %v107, %v110
    %vm112 = vweird.f32 %v106
    %vm113 = vweird.f32 %v107
    %vm114 = vmor %vm112, %vm113
    %v115 = vsel %vm114, %v107, %v111
    %v116 = vand.u32 2147483647, %v106
    %vm117 = vcmp.eq.f32.partialorder %v116, 8.507059e+37
    %v118 = vand.u32 %v106, 2147483648
    %v119 = vor.u32 1.1754944e-38, %v118
    %v120 = vsel %vm117, %v119, %v115
    %v121 = vmul.f32 %v97, %v120
    %v122 = vmul.f32 %v99, %v120
    %v123 = vmul.f32 %v121, %v44
    %v124 = vmul.f32 %v122, %v45
    %v125 = vsel %vm54, %v123, 0.0
    %v126 = vsel %vm54, %v124, 0.0
    %v127 = vadd.f32 %v125, %v126
    %v128 = vrot.slane %v127, 4
    %v129 = vadd.f32 %v127, %v128
    %v130 = vrot.slane %v129, 2
    %v131 = vadd.f32 %v129, %v130
    %v132 = vrot.slane %v131, 1
    %v133 = vadd.f32 %v131, %v132
    %vm134 = vcmask 516096
    %135 = vst.msk [vmem:[#allocation7] sm:$0x1] %vm134, %v133
    // Predicated region
    $region18: #{attention_pallas.1} parent=1 // pred_check
      _
    $region19: #{attention_pallas.1} parent=1 // pred_check_branch
      %137 = sbr.rel (0) target = $region21
    $region20: #{attention_pallas.1} parent=1 // pred_region
      %139 = vsyncadd [#allocation4], 0
      %s141 = sshll.u32 [#allocation7], 4
      %s142 = int_to_ptr.vmem [resolvable:$true] %s141
      %s143 = sshll.u32 %s2, 4
      %s144 = int_to_ptr.hbm [resolvable:$true] %s143
      %146 = dma.vmem_to_hbm [thread:$0]  %s142, 16, %s144, [#allocation4]
    $region21: #{attention_pallas.1} parent=1 // pred_fallthru
      _
    // Predicated region
    $region22: #{attention_pallas.1} parent=1 // pred_check
      _
    $region23: #{attention_pallas.1} parent=1 // pred_check_branch
      %148 = sbr.rel (0) target = $region25
    $region24: #{attention_pallas.1} parent=1 // pred_region
      %150 = dma.done [#allocation4], 16
    $region25: #{attention_pallas.1} parent=1 // pred_fallthru
      _
    %151 = vsyncpa [#allocation3], 1
    %152 = vsyncpa [#allocation6], 1
    %153 = vsyncpa [#allocation4], 1

</llo_original>
